<compile_context>
chip_gen: v6e
topology: v6e:2x2x1
jax: 0.10.0
libtpu: 0.0.40
codegen_flags: <defaults>
</compile_context>

<pallas_src>
import jax
import jax.numpy as jnp
import numpy as np
from jax.experimental import pallas as pl
from jax.experimental.pallas import tpu as pltpu


def _round_up(x, m):
    return ((x + m - 1) // m) * m


def _chip_vmem_config():
    """Per-generation (budget_bytes, vmem_limit_bytes, split_m_for_two_cores)."""
    try:
        info = pltpu.get_tpu_info()
        vmem_total = int(getattr(info, "vmem_capacity_bytes", 0) or 0)
    except Exception:
        vmem_total = 0
    if vmem_total <= 0:
        vmem_total = 64 * 1024 * 1024  # unknown -> assume smallest (v7x-like)
    if vmem_total <= 80 * 1024 * 1024:
        # v7x-class: 64 MiB VMEM per TensorCore, 2 TCs/chip.
        return 20 * 1024 * 1024, 48 * 1024 * 1024, True
    # v5e / v6e: 128 MiB VMEM, single TensorCore.
    return 48 * 1024 * 1024, 96 * 1024 * 1024, False


# ----------------------------- kernels --------------------------------------

def _sine_kernel_single_k(x_ref, w_ref, b_ref, o_ref):
    """Fast path: whole K in one grid step -> no accumulator round-trips."""
    x = x_ref[...].astype(w_ref.dtype)
    acc = jnp.dot(x, w_ref[...], preferred_element_type=jnp.float32)
    o_ref[...] = jnp.sin(acc + b_ref[...]).astype(o_ref.dtype)


def _sine_kernel_k_tiled(x_ref, w_ref, b_ref, o_ref, acc_ref):
    """K reduction on grid axis 2 (wrapper guarantees >= 2 K steps)."""
    k = pl.program_id(2)
    nk = pl.num_programs(2)
    x = x_ref[...].astype(w_ref.dtype)
    partial = jnp.dot(x, w_ref[...], preferred_element_type=jnp.float32)

    @pl.when(k == 0)
    def _first():
        acc_ref[...] = partial                      # no zero-init pass

    @pl.when(jnp.logical_and(k > 0, k < nk - 1))
    def _middle():
        acc_ref[...] += partial

    @pl.when(k == nk - 1)
    def _last():
        # Last partial is consumed in-register; omega_0 already folded into
        # w_ref / b_ref, so the epilogue is just bias + sin.
        o_ref[...] = jnp.sin(acc_ref[...] + partial + b_ref[...]).astype(o_ref.dtype)


# ----------------------------- tiling ---------------------------------------

def _pick_tiles(M, K, N, *, x_bytes, w_bytes, out_bytes, budget, split_m,
                tile_m=None):
    """Choose (tile_m, tile_k, tile_n) respecting (8,128) + the VMEM budget."""
    # K tile: only block K when large and 128-aligned; must divide K exactly
    # so no out-of-bounds garbage enters the accumulation.
    if K % 128 == 0 and K > 2048:
        tile_k = next(t for t in (2048, 1024, 512, 256, 128) if K % t == 0)
    else:
        tile_k = K

    # N tile: largest lane-dense (multiple-of-128) divisor of N whose
    # double-buffered weight slab stays under half the budget.
    tile_n = N
    if N % 128 == 0:
        tile_n = 128
        for cand in (1024, 768, 512, 384, 256, 128):
            if N % cand == 0 and 2 * tile_k * cand * w_bytes <= budget // 2:
                tile_n = cand
                break

    k_tiled = tile_k < K
    if tile_m is None:
        # Per-step VMEM: double-buffered x / w / bias / out (+ f32 acc scratch).
        fixed = 2 * tile_k * tile_n * w_bytes + 2 * tile_n * 4
        per_row = (2 * tile_k * x_bytes + 2 * tile_n * out_bytes
                   + (tile_n * 4 if k_tiled else 0))
        tm = max(8, (budget - fixed) // per_row)
        tm = min(tm, 2048)
        if split_m and M >= 16:
            # v7x only: keep >= 2 near-equal M blocks so both TensorCores
            # get grid work (avoids a tiny masked last block).
            tm = min(tm, _round_up(-(-M // 2), 8))
        tm = max(8, (tm // 8) * 8)
        tile_m = M if tm >= M else tm
    else:
        tile_m = min(int(tile_m), M)
        if tile_m != M and (tile_m <= 0 or tile_m % 8 != 0):
            raise ValueError(
                f"tile_m={tile_m} must be a positive multiple of 8 (or == M={M})")
    return tile_m, tile_k, tile_n


# ----------------------------- public API -----------------------------------

def prepare_sine_layer_params(weight, bias, omega_0=30.0,
                              compute_dtype=jnp.bfloat16):
    """One-time layout/scale prep (call at init, NOT per forward).

    weight: (out_features, in_features) -- PyTorch nn.Linear layout
    bias:   (out_features,)
    Returns (w_t, b_row): w_t = (omega_0 * W)^T in `compute_dtype` (bf16 by
    default for MXU throughput; use jnp.float32 for strict numerics) and
    b_row = (1, out) = omega_0 * b in float32, so sin(x @ w_t + b_row) equals
    sin(omega_0 * (x @ W^T + b)).
    """
    scale = jnp.asarray(omega_0, jnp.float32)
    w_t = (weight.astype(jnp.float32) * scale).T.astype(compute_dtype)
    b_row = (bias.astype(jnp.float32) * scale).reshape(1, -1)
    return w_t, b_row


def sine_layer(x, w_t, b_row, *, tile_m=None, out_dtype=None):
    """Pallas SineLayer forward: sin(x @ w_t + b_row).

    x:     (..., in_features)
    w_t:   (in_features, out_features)  from prepare_sine_layer_params
    b_row: (1, out_features) float32    from prepare_sine_layer_params
    out_dtype: optional output dtype (e.g. bf16 for inter-layer activations).
    """
    K, N = w_t.shape
    lead = x.shape[:-1]
    assert x.shape[-1] == K, "in_features mismatch"
    assert b_row.shape == (1, N)
    x2d = x.reshape(-1, K)
    M = x2d.shape[0]
    out_dtype = x.dtype if out_dtype is None else out_dtype

    budget, vmem_limit, split_m = _chip_vmem_config()
    x_bytes = jnp.dtype(x.dtype).itemsize
    w_bytes = jnp.dtype(w_t.dtype).itemsize
    out_bytes = jnp.dtype(out_dtype).itemsize

    tile_m, tile_k, tile_n = _pick_tiles(
        M, K, N, x_bytes=x_bytes, w_bytes=w_bytes, out_bytes=out_bytes,
        budget=budget, split_m=split_m, tile_m=tile_m)

    grid = (pl.cdiv(M, tile_m), pl.cdiv(N, tile_n), pl.cdiv(K, tile_k))
    grid_m, grid_n, grid_k = grid

    # Account for tiling revisits: x re-read per N block, W per M block,
    # bias per grid step; output written once.
    cost = pl.CostEstimate(
        flops=2 * M * K * N,
        transcendentals=M * N,
        bytes_accessed=(x_bytes * M * K * grid_n
                        + w_bytes * K * N * grid_m
                        + 4 * N * grid_m * grid_k
                        + out_bytes * M * N),
    )

    if grid_k == 1:
        kernel = _sine_kernel_single_k
        scratch = []
    else:
        kernel = _sine_kernel_k_tiled
        scratch = [pltpu.VMEM((tile_m, tile_n), jnp.float32)]

    out = pl.pallas_call(
        kernel,
        out_shape=jax.ShapeDtypeStruct((M, N), out_dtype),
        grid_spec=pltpu.PrefetchScalarGridSpec(
            num_scalar_prefetch=0,
            grid=grid,
            in_specs=[
                pl.BlockSpec((tile_m, tile_k), lambda i, j, k: (i, k)),  # x
                pl.BlockSpec((tile_k, tile_n), lambda i, j, k: (k, j)),  # (omega*W)^T
                pl.BlockSpec((1, tile_n), lambda i, j, k: (0, j)),       # omega*b
            ],
            out_specs=pl.BlockSpec((tile_m, tile_n), lambda i, j, k: (i, j)),
            scratch_shapes=scratch,
        ),
        compiler_params=pltpu.CompilerParams(
            dimension_semantics=("parallel", "parallel", "arbitrary"),
            vmem_limit_bytes=vmem_limit,
        ),
        cost_estimate=cost,
    )(x2d, w_t, b_row)
    return out.reshape(*lead, N)


def init_sine_layer_params(key, in_features, out_features,
                           is_first=False, omega_0=30.0):
    """Deterministic re-implementation of SineLayer.init_weights + Linear bias."""
    kw, kb = jax.random.split(key)
    if is_first:
        bound_w = 1.0 / in_features
    else:
        bound_w = np.sqrt(6.0 / in_features) / omega_0
    weight = jax.random.uniform(
        kw, (out_features, in_features), jnp.float32,
        minval=-bound_w, maxval=bound_w)
    # PyTorch nn.Linear default bias init: U(-1/sqrt(in), 1/sqrt(in))
    bound_b = 1.0 / np.sqrt(in_features)
    bias = jax.random.uniform(
        kb, (out_features,), jnp.float32, minval=-bound_b, maxval=bound_b)
    return weight, bias


if __name__ == "__main__":
    key = jax.random.PRNGKey(0)
    k_x, k_p, k_x2, k_p2 = jax.random.split(key, 4)
    omega_0 = 30.0

    # --- small demo shape (typical first SIREN layer), full f32 path --------
    batch, in_features, out_features = 8, 16, 32
    x = jax.random.normal(k_x, (batch, in_features), jnp.float32)
    weight, bias = init_sine_layer_params(
        k_p, in_features, out_features, is_first=True, omega_0=omega_0)
    w_t, b_row = prepare_sine_layer_params(weight, bias, omega_0,
                                           compute_dtype=jnp.float32)  # one-time
    y = jax.block_until_ready(sine_layer(x, w_t, b_row))

    y_ref = jnp.sin(omega_0 * (x @ weight.T + bias))
    assert y.shape == (batch, out_features)
    np.testing.assert_allclose(np.asarray(y), np.asarray(y_ref),
                               rtol=1e-5, atol=2e-5)

    # --- larger shape: M/N/K tiling + bf16 MXU operands, f32 accumulation ---
    M2, K2, N2 = 300, 2560, 384     # K blocked (tile_k=512 -> grid_k=5)
    x2 = jax.random.normal(k_x2, (M2, K2), jnp.float32)
    w2, b2 = init_sine_layer_params(k_p2, K2, N2, is_first=False, omega_0=omega_0)
    w2_t, b2_row = prepare_sine_layer_params(w2, b2, omega_0,
                                             compute_dtype=jnp.bfloat16)
    y2 = jax.block_until_ready(sine_layer(x2, w2_t, b2_row))

    # Reference with matching bf16 operand rounding and f32 accumulation
    # (validates the kernel; bf16-vs-f32 operand error is a modelling choice).
    y2_ref = jnp.sin(
        jnp.dot(x2.astype(jnp.bfloat16), w2_t,
                preferred_element_type=jnp.float32) + b2_row)
    np.testing.assert_allclose(np.asarray(y2), np.asarray(y2_ref),
                               rtol=2e-3, atol=2e-3)

    print("KERNEL_OK")
</pallas_src>

<mosaic_0001>
module attributes {stable_mosaic.version = 11 : i64} {
  func.func @_sine_kernel_single_k(%arg0: i32, %arg1: i32, %arg2: i32, %arg3: memref<8x16xf32, #tpu.memory_space<vmem>>, %arg4: memref<16x32xf32, #tpu.memory_space<vmem>>, %arg5: memref<1x32xf32, #tpu.memory_space<vmem>>, %arg6: memref<8x32xf32, #tpu.memory_space<vmem>>) attributes {dimension_semantics = [#tpu.dimension_semantics<parallel>, #tpu.dimension_semantics<parallel>, #tpu.dimension_semantics<arbitrary>], iteration_bounds = array<i64: 1, 1, 1>, scalar_prefetch = 0 : i64, scratch_operands = 0 : i64, tpu.core_type = #tpu.core_type<tc>, window_params = [{transform_indices = @transform_0, window_bounds = array<i64: 8, 16>}, {transform_indices = @transform_1, window_bounds = array<i64: 16, 32>}, {transform_indices = @transform_2, window_bounds = array<i64: 1, 32>}, {transform_indices = @transform_3, window_bounds = array<i64: 8, 32>}]} {
    %c0 = arith.constant 0 : index
    %c0_0 = arith.constant 0 : index
    %0 = vector.load %arg3[%c0, %c0_0] : memref<8x16xf32, #tpu.memory_space<vmem>>, vector<8x16xf32>
    %c0_1 = arith.constant 0 : index
    %c0_2 = arith.constant 0 : index
    %1 = vector.load %arg4[%c0_1, %c0_2] : memref<16x32xf32, #tpu.memory_space<vmem>>, vector<16x32xf32>
    %cst = arith.constant dense<0.000000e+00> : vector<8x32xf32>
    %2 = tpu.matmul %0, %1, %cst {dimension_numbers = #tpu.dot_dimension_numbers<[1], [0], [0], [1], [0, 0, 1, 1], [], []>} : vector<8x16xf32>, vector<16x32xf32>, vector<8x32xf32> -> vector<8x32xf32>
    %c0_3 = arith.constant 0 : index
    %c0_4 = arith.constant 0 : index
    %3 = vector.load %arg5[%c0_3, %c0_4] : memref<1x32xf32, #tpu.memory_space<vmem>>, vector<1x32xf32>
    %4 = vector.broadcast %3 : vector<1x32xf32> to vector<8x32xf32>
    %5 = arith.addf %2, %4 : vector<8x32xf32>
    %6 = math.sin %5 : vector<8x32xf32>
    %c0_5 = arith.constant 0 : index
    %c0_6 = arith.constant 0 : index
    %7 = vector.load %arg6[%c0_5, %c0_6] : memref<8x32xf32, #tpu.memory_space<vmem>>, vector<8x32xf32>
    tpu.vector_store %arg6[%c0_5, %c0_6], %6 {strides = array<i32>} : memref<8x32xf32, #tpu.memory_space<vmem>>, vector<8x32xf32>,
    return
  }
  func.func @transform_0(%arg0: i32, %arg1: i32, %arg2: i32) -> (i32, i32) {
    %c0_i32 = arith.constant 0 : i32
    return %arg0, %arg2 : i32, i32
  }
  func.func @transform_1(%arg0: i32, %arg1: i32, %arg2: i32) -> (i32, i32) {
    %c0_i32 = arith.constant 0 : i32
    return %arg2, %arg1 : i32, i32
  }
  func.func @transform_2(%arg0: i32, %arg1: i32, %arg2: i32) -> (i32, i32) {
    %c0_i32 = arith.constant 0 : i32
    %c0_i32_0 = arith.constant 0 : i32
    return %c0_i32, %arg1 : i32, i32
  }
  func.func @transform_3(%arg0: i32, %arg1: i32, %arg2: i32) -> (i32, i32) {
    %c0_i32 = arith.constant 0 : i32
    return %arg0, %arg1 : i32, i32
  }
}

</mosaic_0001>

<llo_original>
// kernel: tpu_custom_call.1
$region0: #{tpu_custom_call.1}
  #allocation0 [shape = 'u32[]', space=smem, size = 0x4, offset = 0x4, fixed_abs, tag = 'smem constant byte address 0x4 - core index']
  #allocation1 [shape = 'u32[144,128]{1,0:T(1,128)}', space=vmem, size = 0x12000, scoped, tag = 'internal scratch']
  %s0 = inlined_call_operand.hbm [shape: f32[8,16], index: 0, kind: input, shape index: {}]
  %s1 = inlined_call_operand.hbm [shape: f32[16,32], index: 1, kind: input, shape index: {}]
  %s2 = inlined_call_operand.vmem [shape: f32[1,32], index: 2, kind: input, shape index: {}]
  %s3 = inlined_call_operand.hbm [shape: f32[8,32], index: 3, kind: output, shape index: {}]
  %s4 = sld [smem:[#allocation0]]
  $region30: #{tpu_custom_call.1} parent=0
    _
  %s6 = ssub.s32 1, %s4
  %s7 = scalar_select 0, %s6, %s4
  $region1: #{tpu_custom_call.1} parent=0
    #allocation2 [shape = 'u8[4096]{0}', space=vmem, size = 0x1000, scoped, tag = 'input window, operand 0, single buffered']
    #allocation3 [shape = 's32[1]{0}', space=sflag, size = 0x4, scoped, tag = 'scoped memory for tpu_custom_call.1']
    #allocation4 [shape = 's32[1]{0}', space=sflag, size = 0x4, scoped, tag = 'scoped memory for tpu_custom_call.1']
    #allocation5 [shape = 'u8[8192]{0}', space=vmem, size = 0x2000, scoped, tag = 'input window, operand 1, single buffered']
    #allocation6 [shape = 's32[1]{0}', space=sflag, size = 0x4, scoped, tag = 'scoped memory for tpu_custom_call.1']
    #allocation7 [shape = 'u8[4096]{0}', space=vmem, size = 0x1000, scoped, tag = 'output window, operand 0, single buffered']
    %8 = vsyncpa [#allocation3], 0
    %9 = vsyncpa [#allocation6], 0
    %10 = vsyncpa [#allocation4], 0
    // Predicated region
    $region2: #{tpu_custom_call.1} parent=1 // pred_check
      _
    $region3: #{tpu_custom_call.1} parent=1 // pred_check_branch
      %12 = sbr.rel (0) target = $region5
    $region4: #{tpu_custom_call.1} parent=1 // pred_region
      %s14 = ssub.s32 128, 128
      %15 = vsyncadd [#allocation3], %s14
      %s17 = sshll.u32 [#allocation2], 4
      %s18 = int_to_ptr.vmem [resolvable:$true] %s17
      %20 = dma.hbm_to_vmem [thread:$0]  %s0, 128, %s18, [#allocation3]
    $region5: #{tpu_custom_call.1} parent=1 // pred_fallthru
      _
    // Predicated region
    $region6: #{tpu_custom_call.1} parent=1 // pred_check
      _
    $region7: #{tpu_custom_call.1} parent=1 // pred_check_branch
      %22 = sbr.rel (0) target = $region9
    $region8: #{tpu_custom_call.1} parent=1 // pred_region
      %s24 = ssub.s32 256, 256
      %25 = vsyncadd [#allocation6], %s24
      %s26 = sshll.u32 [#allocation5], 4
      %s27 = int_to_ptr.vmem [resolvable:$true] %s26
      %32 = dma.hbm_to_vmem [thread:$0]  %s1, 256, %s27, [#allocation6], 128, 128, 8
    $region9: #{tpu_custom_call.1} parent=1 // pred_fallthru
      _
    // Predicated region
    $region10: #{tpu_custom_call.1} parent=1 // pred_check
      _
    $region11: #{tpu_custom_call.1} parent=1 // pred_check_branch
      %34 = sbr.rel (0) target = $region13
    $region12: #{tpu_custom_call.1} parent=1 // pred_region
      _
    $region13: #{tpu_custom_call.1} parent=1 // pred_fallthru
      _
    // Predicated region
    $region14: #{tpu_custom_call.1} parent=1 // pred_check
      _
    $region15: #{tpu_custom_call.1} parent=1 // pred_check_branch
      %36 = sbr.rel (0) target = $region17
    $region16: #{tpu_custom_call.1} parent=1 // pred_region
      %37 = dma.done [#allocation3], 128
    $region17: #{tpu_custom_call.1} parent=1 // pred_fallthru
      _
    // Predicated region
    $region18: #{tpu_custom_call.1} parent=1 // pred_check
      _
    $region19: #{tpu_custom_call.1} parent=1 // pred_check_branch
      %39 = sbr.rel (0) target = $region21
    $region20: #{tpu_custom_call.1} parent=1 // pred_region
      %40 = dma.done [#allocation6], 256
    $region21: #{tpu_custom_call.1} parent=1 // pred_fallthru
      _
    %v41 = vld [vmem:[#allocation2] sm:$0xff]
    %v42 = vld [vmem:[#allocation5] sm:$0xff]
    %v43 = vld [vmem:[#allocation5 + $0x8] sm:$0xff]
    %v44 = vld [vmem:[%s2] sm:$0x1]
    %v46 = vlaneseq
    %v47 = vshrl.u32 %v46, 7
    %v48 = vsub.s32 0, %v47
    %v49 = vrot.slane %v44, %v48
    %vm51 = vcmask 130048
    %v53 = vsel %vm51, %v41, 0
    %55 = vmatprep.subr.mxu0 0.0
    %56 = vmatpush1.msra.mxu0 0.0
    %57 = vmatprep.subr.mxu0 0.0
    %58 = vmatpush1.msra.mxu0 0.0
    %59 = vmatprep.subr.mxu0 0.0
    %60 = vmatpush1.msra.mxu0 0.0
    %61 = vmatprep.subr.mxu0 0.0
    %62 = vmatpush1.msra.mxu0 0.0
    %63 = vmatprep.subr.mxu0 0.0
    %64 = vmatpush1.msra.mxu0 0.0
    %65 = vmatprep.subr.mxu0 0.0
    %66 = vmatpush1.msra.mxu0 0.0
    %67 = vmatprep.subr.mxu0 0.0
    %68 = vmatpush1.msra.mxu0 0.0
    %69 = vmatprep.subr.mxu0 0.0
    %70 = vmatpush1.msra.mxu0 0.0
    %71 = vmatprep.subr.mxu0 0.0
    %72 = vmatpush1.msra.mxu0 0.0
    %73 = vmatprep.subr.mxu0 0.0
    %74 = vmatpush1.msra.mxu0 0.0
    %75 = vmatprep.subr.mxu0 0.0
    %76 = vmatpush1.msra.mxu0 0.0
    %77 = vmatprep.subr.mxu0 0.0
    %78 = vmatpush1.msra.mxu0 0.0
    %79 = vmatprep.subr.mxu0 0.0
    %80 = vmatpush1.msra.mxu0 0.0
    %81 = vmatprep.subr.mxu0 0.0
    %82 = vmatpush1.msra.mxu0 0.0
    %83 = vmatprep.subr.mxu0 0.0
    %84 = vmatpush1.msra.mxu0 %v43
    %85 = vmatprep.subr.mxu0 0.0
    %86 = vmatpush1.msra.mxu0 %v42
    %87 = vmatprep.subr.mxu0 0.0
    %88 = vmatpush2.msra.mxu0 0.0
    %89 = vmatprep.subr.mxu0 0.0
    %90 = vmatpush2.msra.mxu0 0.0
    %91 = vmatprep.subr.mxu0 0.0
    %92 = vmatpush2.msra.mxu0 0.0
    %93 = vmatprep.subr.mxu0 0.0
    %94 = vmatpush2.msra.mxu0 0.0
    %95 = vmatprep.subr.mxu0 0.0
    %96 = vmatpush2.msra.mxu0 0.0
    %97 = vmatprep.subr.mxu0 0.0
    %98 = vmatpush2.msra.mxu0 0.0
    %99 = vmatprep.subr.mxu0 0.0
    %100 = vmatpush2.msra.mxu0 0.0
    %101 = vmatprep.subr.mxu0 0.0
    %102 = vmatpush2.msra.mxu0 0.0
    %103 = vmatprep.subr.mxu0 0.0
    %104 = vmatpush2.msra.mxu0 0.0
    %105 = vmatprep.subr.mxu0 0.0
    %106 = vmatpush2.msra.mxu0 0.0
    %107 = vmatprep.subr.mxu0 0.0
    %108 = vmatpush2.msra.mxu0 0.0
    %109 = vmatprep.subr.mxu0 0.0
    %110 = vmatpush2.msra.mxu0 0.0
    %111 = vmatprep.subr.mxu0 0.0
    %112 = vmatpush2.msra.mxu0 0.0
    %113 = vmatprep.subr.mxu0 0.0
    %114 = vmatpush2.msra.mxu0 0.0
    %115 = vmatprep.subr.mxu0 0.0
    %116 = vmatpush2.msra.mxu0 0.0
    %117 = vmatprep.subr.mxu0 0.0
    %118 = vmatpush2.msra.mxu0 0.0
    %119 = vmatprep.mubr.f32.mxu0 0.0
    %120 = vmatmul.mubr.f32.gmra.mxu0 %v53
    %v121 = vpop.f32.mrf.mxu0
    %v122 = vadd.f32 %v49, %v121
    %v123 = vpop.f32.mrf.mxu0
    %124 = vdwg.mxu0
    %v125 = vand.u32 2147483647, %v122
    %vm126 = vcmp.le.f32.partialorder %v125, 0.7853982
    %vm127 = vcmp.lt.s32.totalorder %v122, 0
    %v128 = vand.u32 %v122, 2139095040
    %v129 = vshrl.u32 %v128, 23
    %v130 = vsub.s32 %v129, 127
    %v131 = vand.u32 2147483647, %v122
    %v132 = vand.u32 %v131, 8388607
    %v133 = vor.u32 %v132, 8388608
    %v134 = vsub.s32 0, %v133
    %v135 = vadd.s32 %v130, 1
    %vm136 = vcmp.gt.s32.totalorder %v135, 0
    %v137 = vsel %vm136, %v135, 0
    %v138 = vshrl.u32 %v137, 5
    %v139 = vand.u32 %v137, 31
    %v140 = vsub.s32 32, %v139
    %v141 = vshrl.u32 683565275, %v140
    %v142 = vshll.u32 683565275, %v139
    %v143 = vshrl.u32 2475754826, %v140
    %v144 = vor.u32 %v142, %v143
    %v145 = vshll.u32 2475754826, %v139
    %v146 = vshrl.u32 2131351028, %v140
    %v147 = vor.u32 %v145, %v146
    %v148 = vshll.u32 2131351028, %v139
    %v149 = vshrl.u32 2102212464, %v140
    %v150 = vor.u32 %v148, %v149
    %v151 = vshll.u32 2102212464, %v139
    %v152 = vshrl.u32 920167782, %v140
    %v153 = vor.u32 %v151, %v152
    %v154 = vshll.u32 920167782, %v139
    %v155 = vshrl.u32 1326507024, %v140
    %v156 = vor.u32 %v154, %v155
    %vm157 = vcmp.lt.s32.totalorder %v138, 1
    %vm158 = vcmp.lt.s32.totalorder %v138, 2
    %vm159 = vcmp.lt.s32.totalorder %v138, 3
    %vm160 = vcmp.lt.s32.totalorder %v138, 4
    %v161 = vsel %vm157, %v141, %v144
    %v162 = vsel %vm160, %v150, 2102212464
    %v163 = vsel %vm159, %v147, %v162
    %v164 = vsel %vm158, %v161, %v163
    %v165 = vsel %vm157, %v144, %v147
    %v166 = vsel %vm160, %v153, 920167782
    %v167 = vsel %vm159, %v150, %v166
    %v168 = vsel %vm158, %v165, %v167
    %v169 = vsel %vm157, %v147, %v150
    %v170 = vsel %vm160, %v156, 1326507024
    %v171 = vsel %vm159, %v153, %v170
    %v172 = vsel %vm158, %v169, %v171
    %v173 = vshll.u32 %v133, 8
    %v174 = vmul.u32.u64.compose %v173, %v172
    %v175 = vextract.low.u32 %v174
    %v176 = vextract.high.u32 %v174
    %v177 = vmul.u32.u64.compose %v173, %v168
    %v178 = vextract.low.u32 %v177
    %v179 = vextract.high.u32 %v177
    %v180 = vmul.u32 %v173, %v164
    %v181 = vadd.s32 %v176, %v178
    %vm182 = vc.u32 %v176, %v178
    %v183 = vadd.s32 %v179, 1
    %v184 = vsel %vm182, %v183, %v179
    %v185 = vadd.s32 %v180, %v184
    %v186 = vadd.s32 %v185, 536870912
    %v187 = vshrl.u32 %v186, 30
    %v188 = vshll.u32 %v187, 30
    %v189 = vsub.s32 %v185, %v188
    %vm190 = vcmp.lt.s32.totalorder %v189, 0
    %v191 = vsub.s32 0, %v189
    %v192 = vsel %vm190, %v191, %v189
    %v193 = vclz %v192
    %v194 = vsub.s32 %v193, 2
    %vm195 = vcmp.gt.s32.totalorder 0, %v194
    %v196 = vsel %vm195, 0, %v194
    %v197 = vsub.s32 32, %v196
    %v198 = vshll.u32 %v189, %v196
    %v199 = vshrl.u32 %v181, %v197
    %v200 = vor.u32 %v198, %v199
    %v201 = vsub.s32 4294967266, %v196
    %v202 = vadd.s32 %v201, 127
    %v203 = vshll.u32 %v202, 23
    %v204 = vor.u32 4788187, %v203
    %v205 = vand.u32 2147483647, %v204
    %v207 = vcvt.s32.f32 %v200
    %v208 = vmul.f32 %v207, %v205
    %v209 = vxor.u32 %v208, 2147483648
    %v210 = vsel %vm127, %v209, %v208
    %v211 = vsub.s32 4, %v187
    %v212 = vsel %vm127, %v211, %v187
    %v213 = vsel %vm126, %v122, %v210
    %v214 = vsel %vm126, 0, %v212
    %v215 = vcosq.f32.pop %v213
    %v216 = vsinq.f32.pop %v213
    %vm217 = vweird.f32 %v122
    %v218 = vadd.s32 %v214, 3
    %v219 = vand.u32 %v218, 3
    %vm220 = vcmp.lt.s32.totalorder %v219, 2
    %vm221 = vcmp.eq.s32.totalorder %v219, 0
    %v222 = vxor.u32 %v216, 2147483648
    %v223 = vsel %vm221, %v215, %v222
    %vm224 = vcmp.eq.s32.totalorder %v219, 2
    %v225 = vxor.u32 %v215, 2147483648
    %v226 = vsel %vm224, %v225, %v216
    %v227 = vsel %vm220, %v223, %v226
    %v228 = vsel %vm217, nan, %v227
    %vm229 = vcmask 261120
    %230 = vst.msk [vmem:[#allocation7] sm:$0xff] %vm229, %v228
    // Predicated region
    $region22: #{tpu_custom_call.1} parent=1 // pred_check
      _
    $region23: #{tpu_custom_call.1} parent=1 // pred_check_branch
      %232 = sbr.rel (0) target = $region25
    $region24: #{tpu_custom_call.1} parent=1 // pred_region
      %s234 = ssub.s32 128, 128
      %235 = vsyncadd [#allocation4], %s234
      %s237 = sshll.u32 [#allocation7], 4
      %s238 = int_to_ptr.vmem [resolvable:$true] %s237
      %240 = dma.vmem_to_hbm [thread:$0]  %s238, 128, %s3, [#allocation4]
    $region25: #{tpu_custom_call.1} parent=1 // pred_fallthru
      _
    // Predicated region
    $region26: #{tpu_custom_call.1} parent=1 // pred_check
      _
    $region27: #{tpu_custom_call.1} parent=1 // pred_check_branch
      %242 = sbr.rel (0) target = $region29
    $region28: #{tpu_custom_call.1} parent=1 // pred_region
      %243 = dma.done [#allocation4], 128
    $region29: #{tpu_custom_call.1} parent=1 // pred_fallthru
      _
    %244 = vsyncpa [#allocation3], 1
    %245 = vsyncpa [#allocation6], 1
    %246 = vsyncpa [#allocation4], 1

</llo_original>
